<compile_context>
chip_gen: v7x
topology: tpu7x:2x2x1
jax: 0.10.0
libtpu: 0.0.40
codegen_flags: <defaults>
</compile_context>

<pallas_src>
import jax
import jax.numpy as jnp
from jax.experimental import pallas as pl
from jax.experimental.pallas import tpu as pltpu


def mlp_kernel(x_ref, w1_ref, b1_ref, w2_ref, b2_ref, o_ref):
    # x: (TB_p, P*D) packed rows; w1: (P*D, P*H) block-diagonal.
    x = x_ref[...].astype(w1_ref.dtype)            # optional bf16 cast (cheap, VPU)
    h = jnp.dot(x, w1_ref[...], preferred_element_type=jnp.float32)
    h = jnp.maximum(h + b1_ref[...], 0.0)          # (TB_p, P*H), f32
    # fc2 as a second block-diagonal matmul: grouped (H -> 1) reduction per
    # packed slot, output stays (TB_p, P) => lane-denser store than (TB, 1).
    out = jnp.dot(h, w2_ref[...], preferred_element_type=jnp.float32) + b2_ref[...]
    o_ref[...] = out.astype(o_ref.dtype)


def net_1_4_1_forward(x, params, *, block_b=32768, matmul_dtype=jnp.float32):
    """Forward pass of Net1_4_1.

    x: [B, input_dim] float32.
    params: dict with w1 [D, 4], b1 [1, 4], w2 [1, 4] (PyTorch fc2.weight layout),
            b2 [1, 1].
    block_b: logical batch rows per grid step.
    matmul_dtype: jnp.float32 (exact-ish) or jnp.bfloat16 (single MXU pass,
                  f32 accumulation; faster on v6e/v7x, looser tolerance).
    """
    B, D = x.shape
    H = params["w1"].shape[1]              # hidden width (4)
    P = max(1, 128 // D)                   # logical rows packed per 128-lane row

    # --- pack rows: (B, D) -> (rows, P*D). Free row-major reshape when B is a
    # multiple of P; otherwise pad < P rows (corner case, noted by the review).
    rem = (-B) % P
    if rem:
        x = jnp.pad(x, ((0, rem), (0, 0)))
    Bp = B + rem
    rows = Bp // P
    xp = x.reshape(rows, P * D)

    # --- block-diagonal packed weights (tiny, built once per call) ---
    w1 = params["w1"].astype(matmul_dtype)                            # (D, H)
    w1_bd = jnp.kron(jnp.eye(P, dtype=matmul_dtype), w1)              # (P*D, P*H)
    w2_bd = jnp.kron(jnp.eye(P, dtype=jnp.float32), params["w2"].T)   # (P*H, P)
    b1_t = jnp.tile(params["b1"], (1, P))                             # (1, P*H)
    b2 = params["b2"]                                                 # (1, 1)

    # --- batch tile: packed rows per grid step ---
    TBp = max(8, block_b // P)
    # Keep double-buffered x + out blocks within ~24 MiB of VMEM (safe under
    # v7x's 64 MiB physical / 32 MiB scoped default; plenty on v5e/v6e).
    lanes_x = ((P * D + 127) // 128) * 128
    per_row_bytes = 2 * (lanes_x + 128) * 4        # dbl-buffered in + out, f32
    TBp = min(TBp, max(8, (24 << 20) // per_row_bytes))
    # Keep >= 2 grid steps when the batch allows it (v7x megacore split).
    if rows > 16:
        TBp = min(TBp, -(-rows // 2))
    if TBp >= rows:
        TBp = rows                                  # single full-extent block
    else:
        TBp = max(8, (TBp // 8) * 8)                # sublane-aligned tile
    grid = (pl.cdiv(rows, TBp),)                    # last block may be partial

    flops = 2 * Bp * D * H + 4 * Bp * H
    bytes_accessed = Bp * D * 4 + Bp * 4 + (w1_bd.size + w2_bd.size + b1_t.size + 1) * 4

    out_p = pl.pallas_call(
        mlp_kernel,
        out_shape=jax.ShapeDtypeStruct((rows, P), jnp.float32),
        grid_spec=pltpu.PrefetchScalarGridSpec(
            num_scalar_prefetch=0,
            grid=grid,
            in_specs=[
                # x: streamed, lane-dense packed batch tiles.
                pl.BlockSpec((TBp, P * D), lambda i: (i, 0)),
                # Weights / biases: full arrays, resident across all steps.
                pl.BlockSpec((P * D, P * H), lambda i: (0, 0)),
                pl.BlockSpec((1, P * H), lambda i: (0, 0)),
                pl.BlockSpec((P * H, P), lambda i: (0, 0)),
                pl.BlockSpec((1, 1), lambda i: (0, 0)),
            ],
            out_specs=pl.BlockSpec((TBp, P), lambda i: (i, 0)),
        ),
        compiler_params=pltpu.CompilerParams(
            dimension_semantics=("parallel",),
            vmem_limit_bytes=32 * 1024 * 1024,
        ),
        cost_estimate=pl.CostEstimate(
            flops=int(flops),
            transcendentals=0,
            bytes_accessed=int(bytes_accessed),
        ),
    )(xp, w1_bd, b1_t, w2_bd, b2)

    # (rows, P) row-major == (Bp, 1) in logical-row order; drop padded tail rows.
    return out_p.reshape(Bp, 1)[:B]


def init_params(key, input_dim):
    """Deterministic init mimicking torch.nn.Linear (uniform +/- 1/sqrt(fan_in))."""
    def linear(k, fan_in, fan_out):
        k_w, k_b = jax.random.split(k)
        bound = 1.0 / jnp.sqrt(fan_in)
        w = jax.random.uniform(k_w, (fan_in, fan_out), jnp.float32, -bound, bound)
        b = jax.random.uniform(k_b, (1, fan_out), jnp.float32, -bound, bound)
        return w, b

    k1, k2 = jax.random.split(key, 2)
    w1, b1 = linear(k1, input_dim, 4)        # fc1: input_dim -> 4
    w2t, b2 = linear(k2, 4, 1)               # fc2: 4 -> 1
    # Store fc2 weight as a (1, 4) row (same layout as PyTorch fc2.weight).
    return {"w1": w1, "b1": b1, "w2": w2t.T, "b2": b2}


def reference_forward(x, p):
    h1 = jnp.maximum(x @ p["w1"] + p["b1"], 0.0)
    return h1 @ p["w2"].T + p["b2"]


if __name__ == "__main__":
    key = jax.random.PRNGKey(0)
    k_x, k_p, k_x2, k_x3 = jax.random.split(key, 4)

    batch, input_dim = 8, 32
    params = init_params(k_p, input_dim)

    # 1) Small, exactly-packed case.
    x = jax.random.normal(k_x, (batch, input_dim), jnp.float32)
    out = jax.block_until_ready(net_1_4_1_forward(x, params))
    ref = reference_forward(x, params)
    assert out.shape == (batch, 1), out.shape
    assert jnp.allclose(out, ref, atol=1e-5, rtol=1e-5), "mismatch vs JAX reference"

    # 2) Multi-tile case with a partial last block (no full-tile padding).
    batch2 = 1000
    x2 = jax.random.normal(k_x2, (batch2, input_dim), jnp.float32)
    out2 = jax.block_until_ready(net_1_4_1_forward(x2, params, block_b=256))
    ref2 = reference_forward(x2, params)
    assert out2.shape == (batch2, 1), out2.shape
    assert jnp.allclose(out2, ref2, atol=1e-5, rtol=1e-5), "mismatch (partial block)"

    # 3) Batch not divisible by the pack factor (exercises the small pad path).
    batch3 = 10
    x3 = jax.random.normal(k_x3, (batch3, input_dim), jnp.float32)
    out3 = jax.block_until_ready(net_1_4_1_forward(x3, params))
    ref3 = reference_forward(x3, params)
    assert out3.shape == (batch3, 1), out3.shape
    assert jnp.allclose(out3, ref3, atol=1e-5, rtol=1e-5), "mismatch (ragged pack)"

    # 4) bf16 MXU path (v6e/v7x single-pass matmul) -> looser tolerance.
    out_bf16 = jax.block_until_ready(
        net_1_4_1_forward(x2, params, block_b=256, matmul_dtype=jnp.bfloat16))
    assert jnp.allclose(out_bf16, ref2, atol=5e-2, rtol=5e-2), "mismatch (bf16 path)"

    print("KERNEL_OK")
</pallas_src>

<mosaic_0001>
module attributes {stable_mosaic.version = 11 : i64} {
  func.func @mlp_kernel(%arg0: i32, %arg1: memref<2x128xf32, #tpu.memory_space<vmem>>, %arg2: memref<128x16xf32, #tpu.memory_space<vmem>>, %arg3: memref<1x16xf32, #tpu.memory_space<vmem>>, %arg4: memref<16x4xf32, #tpu.memory_space<vmem>>, %arg5: memref<1x1xf32, #tpu.memory_space<vmem>>, %arg6: memref<2x4xf32, #tpu.memory_space<vmem>>) attributes {dimension_semantics = [#tpu.dimension_semantics<parallel>], iteration_bounds = array<i64: 1>, scalar_prefetch = 0 : i64, scratch_operands = 0 : i64, tpu.core_type = #tpu.core_type<tc>, window_params = [{transform_indices = @transform_0, window_bounds = array<i64: 2, 128>}, {pipeline_mode = #tpu.pipeline_mode<synchronous>, transform_indices = @transform_1, window_bounds = array<i64: 128, 16>}, {pipeline_mode = #tpu.pipeline_mode<synchronous>, transform_indices = @transform_2, window_bounds = array<i64: 1, 16>}, {pipeline_mode = #tpu.pipeline_mode<synchronous>, transform_indices = @transform_3, window_bounds = array<i64: 16, 4>}, {pipeline_mode = #tpu.pipeline_mode<synchronous>, transform_indices = @transform_4, window_bounds = array<i64: 1, 1>}, {transform_indices = @transform_5, window_bounds = array<i64: 2, 4>}]} {
    %c0 = arith.constant 0 : index
    %c0_0 = arith.constant 0 : index
    %0 = vector.load %arg1[%c0, %c0_0] : memref<2x128xf32, #tpu.memory_space<vmem>>, vector<2x128xf32>
    %c0_1 = arith.constant 0 : index
    %c0_2 = arith.constant 0 : index
    %1 = vector.load %arg2[%c0_1, %c0_2] : memref<128x16xf32, #tpu.memory_space<vmem>>, vector<128x16xf32>
    %cst = arith.constant dense<0.000000e+00> : vector<2x16xf32>
    %2 = tpu.matmul %0, %1, %cst {dimension_numbers = #tpu.dot_dimension_numbers<[1], [0], [0], [1], [0, 0, 1, 1], [], []>} : vector<2x128xf32>, vector<128x16xf32>, vector<2x16xf32> -> vector<2x16xf32>
    %c0_3 = arith.constant 0 : index
    %c0_4 = arith.constant 0 : index
    %3 = vector.load %arg3[%c0_3, %c0_4] : memref<1x16xf32, #tpu.memory_space<vmem>>, vector<1x16xf32>
    %4 = vector.broadcast %3 : vector<1x16xf32> to vector<2x16xf32>
    %5 = arith.addf %2, %4 : vector<2x16xf32>
    %cst_5 = arith.constant 0.000000e+00 : f32
    %6 = vector.broadcast %cst_5 : f32 to vector<2x16xf32>
    %7 = arith.maximumf %5, %6 : vector<2x16xf32>
    %c0_6 = arith.constant 0 : index
    %c0_7 = arith.constant 0 : index
    %8 = vector.load %arg4[%c0_6, %c0_7] : memref<16x4xf32, #tpu.memory_space<vmem>>, vector<16x4xf32>
    %cst_8 = arith.constant dense<0.000000e+00> : vector<2x4xf32>
    %9 = tpu.matmul %7, %8, %cst_8 {dimension_numbers = #tpu.dot_dimension_numbers<[1], [0], [0], [1], [0, 0, 1, 1], [], []>} : vector<2x16xf32>, vector<16x4xf32>, vector<2x4xf32> -> vector<2x4xf32>
    %c0_9 = arith.constant 0 : index
    %c0_10 = arith.constant 0 : index
    %10 = vector.load %arg5[%c0_9, %c0_10] : memref<1x1xf32, #tpu.memory_space<vmem>>, vector<1x1xf32>
    %11 = vector.broadcast %10 : vector<1x1xf32> to vector<2x4xf32>
    %12 = arith.addf %9, %11 : vector<2x4xf32>
    %c0_11 = arith.constant 0 : index
    %c0_12 = arith.constant 0 : index
    %13 = vector.load %arg6[%c0_11, %c0_12] : memref<2x4xf32, #tpu.memory_space<vmem>>, vector<2x4xf32>
    tpu.vector_store %arg6[%c0_11, %c0_12], %12 {strides = array<i32>} : memref<2x4xf32, #tpu.memory_space<vmem>>, vector<2x4xf32>,
    return
  }
  func.func @transform_0(%arg0: i32) -> (i32, i32) {
    %c0_i32 = arith.constant 0 : i32
    %c0_i32_0 = arith.constant 0 : i32
    return %arg0, %c0_i32 : i32, i32
  }
  func.func @transform_1(%arg0: i32) -> (i32, i32) {
    %c0_i32 = arith.constant 0 : i32
    %c0_i32_0 = arith.constant 0 : i32
    %c0_i32_1 = arith.constant 0 : i32
    return %c0_i32, %c0_i32_0 : i32, i32
  }
  func.func @transform_2(%arg0: i32) -> (i32, i32) {
    %c0_i32 = arith.constant 0 : i32
    %c0_i32_0 = arith.constant 0 : i32
    %c0_i32_1 = arith.constant 0 : i32
    return %c0_i32, %c0_i32_0 : i32, i32
  }
  func.func @transform_3(%arg0: i32) -> (i32, i32) {
    %c0_i32 = arith.constant 0 : i32
    %c0_i32_0 = arith.constant 0 : i32
    %c0_i32_1 = arith.constant 0 : i32
    return %c0_i32, %c0_i32_0 : i32, i32
  }
  func.func @transform_4(%arg0: i32) -> (i32, i32) {
    %c0_i32 = arith.constant 0 : i32
    %c0_i32_0 = arith.constant 0 : i32
    %c0_i32_1 = arith.constant 0 : i32
    return %c0_i32, %c0_i32_0 : i32, i32
  }
  func.func @transform_5(%arg0: i32) -> (i32, i32) {
    %c0_i32 = arith.constant 0 : i32
    %c0_i32_0 = arith.constant 0 : i32
    return %arg0, %c0_i32 : i32, i32
  }
}

</mosaic_0001>

<llo_original>
// kernel: tpu_custom_call.1
$region0: #{tpu_custom_call.1}
  #allocation0 [shape = 'u32[]', space=smem, size = 0x4, offset = 0x4, fixed_abs, tag = 'smem constant byte address 0x4 - core index']
  #allocation1 [shape = 'u32[144,128]{1,0:T(1,128)}', space=vmem, size = 0x12000, scoped, tag = 'internal scratch']
  #allocation2 [shape = 'f32[1,1]{1,0:T(1,128)S(1)}', space=vmem, size = 0x200, scoped, tag = 'scoped memory for tpu_custom_call.1']
  %s0 = inlined_call_operand.vmem [shape: f32[2,128], index: 0, kind: input, shape index: {}]
  %s1 = inlined_call_operand.vmem [shape: f32[128,16], index: 1, kind: input, shape index: {}]
  %s2 = inlined_call_operand.vmem [shape: f32[1,16], index: 2, kind: input, shape index: {}]
  %s3 = inlined_call_operand.vmem [shape: f32[16,4], index: 3, kind: input, shape index: {}]
  %s4 = inlined_call_operand.<no memory space> [shape: f32[1,1], index: 4, kind: input, shape index: {}]
  %s5 = inlined_call_operand.hbm [shape: f32[2,4], index: 5, kind: output, shape index: {}]
  %s6 = sld [smem:[#allocation0]]
  $region30: #{tpu_custom_call.1} parent=0
    _
  %s8 = ssub.s32 1, %s6
  %s9 = scalar_select 0, %s8, %s6
  %v10 = vstv %s4
  %11 = vst [vmem:[#allocation2] sm:$0x1] %v10
  $region1: #{tpu_custom_call.1} parent=0
    #allocation3 [shape = 'u8[1024]{0}', space=vmem, size = 0x400, scoped, tag = 'output window, operand 0, single buffered']
    #allocation4 [shape = 's32[1]{0}', space=sflag, size = 0x4, scoped, tag = 'scoped memory for tpu_custom_call.1']
    %12 = vsyncpa [#allocation4], 0
    // Predicated region
    $region2: #{tpu_custom_call.1} parent=1 // pred_check
      _
    $region3: #{tpu_custom_call.1} parent=1 // pred_check_branch
      %14 = sbr.rel (0) target = $region5
    $region4: #{tpu_custom_call.1} parent=1 // pred_region
      _
    $region5: #{tpu_custom_call.1} parent=1 // pred_fallthru
      _
    // Predicated region
    $region6: #{tpu_custom_call.1} parent=1 // pred_check
      _
    $region7: #{tpu_custom_call.1} parent=1 // pred_check_branch
      %16 = sbr.rel (0) target = $region9
    $region8: #{tpu_custom_call.1} parent=1 // pred_region
      _
    $region9: #{tpu_custom_call.1} parent=1 // pred_fallthru
      _
    // Predicated region
    $region10: #{tpu_custom_call.1} parent=1 // pred_check
      _
    $region11: #{tpu_custom_call.1} parent=1 // pred_check_branch
      %18 = sbr.rel (0) target = $region13
    $region12: #{tpu_custom_call.1} parent=1 // pred_region
      _
    $region13: #{tpu_custom_call.1} parent=1 // pred_fallthru
      _
    // Predicated region
    $region14: #{tpu_custom_call.1} parent=1 // pred_check
      _
    $region15: #{tpu_custom_call.1} parent=1 // pred_check_branch
      %20 = sbr.rel (0) target = $region17
    $region16: #{tpu_custom_call.1} parent=1 // pred_region
      _
    $region17: #{tpu_custom_call.1} parent=1 // pred_fallthru
      _
    // Predicated region
    $region18: #{tpu_custom_call.1} parent=1 // pred_check
      _
    $region19: #{tpu_custom_call.1} parent=1 // pred_check_branch
      %22 = sbr.rel (0) target = $region21
    $region20: #{tpu_custom_call.1} parent=1 // pred_region
      _
    $region21: #{tpu_custom_call.1} parent=1 // pred_fallthru
      _
    %v23 = vld [vmem:[%s0] sm:$0x3]
    %v24 = vld [vmem:[%s1] sm:$0xff]
    %v25 = vld [vmem:[%s1 + $0x8] sm:$0xff]
    %v26 = vld [vmem:[%s1 + $0x10] sm:$0xff]
    %v27 = vld [vmem:[%s1 + $0x18] sm:$0xff]
    %v28 = vld [vmem:[%s1 + $0x20] sm:$0xff]
    %v29 = vld [vmem:[%s1 + $0x28] sm:$0xff]
    %v30 = vld [vmem:[%s1 + $0x30] sm:$0xff]
    %v31 = vld [vmem:[%s1 + $0x38] sm:$0xff]
    %v32 = vld [vmem:[%s1 + $0x40] sm:$0xff]
    %v33 = vld [vmem:[%s1 + $0x48] sm:$0xff]
    %v34 = vld [vmem:[%s1 + $0x50] sm:$0xff]
    %v35 = vld [vmem:[%s1 + $0x58] sm:$0xff]
    %v36 = vld [vmem:[%s1 + $0x60] sm:$0xff]
    %v37 = vld [vmem:[%s1 + $0x68] sm:$0xff]
    %v38 = vld [vmem:[%s1 + $0x70] sm:$0xff]
    %v39 = vld [vmem:[%s1 + $0x78] sm:$0xff]
    %v40 = vld [vmem:[%s2] sm:$0x1]
    %v42 = vlaneseq
    %v43 = vshrl.u32 %v42, 7
    %v44 = vsub.s32 0, %v43
    %v45 = vrot.slane %v40, %v44
    %47 = vmatprep.subr.mxu0 0.0
    %48 = vmatpush1.msra.mxu0 %v24
    %49 = vmatprep.subr.mxu0 0.0
    %50 = vmatpush1.msra.mxu0 %v25
    %51 = vmatprep.subr.mxu0 0.0
    %52 = vmatpush1.msra.mxu0 %v26
    %53 = vmatprep.subr.mxu0 0.0
    %54 = vmatpush1.msra.mxu0 %v27
    %55 = vmatprep.subr.mxu0 0.0
    %56 = vmatpush1.msra.mxu0 %v28
    %57 = vmatprep.subr.mxu0 0.0
    %58 = vmatpush1.msra.mxu0 %v29
    %59 = vmatprep.subr.mxu0 0.0
    %60 = vmatpush1.msra.mxu0 %v30
    %61 = vmatprep.subr.mxu0 0.0
    %62 = vmatpush1.msra.mxu0 %v31
    %63 = vmatprep.subr.mxu0 0.0
    %64 = vmatpush1.msra.mxu0 %v32
    %65 = vmatprep.subr.mxu0 0.0
    %66 = vmatpush1.msra.mxu0 %v33
    %67 = vmatprep.subr.mxu0 0.0
    %68 = vmatpush1.msra.mxu0 %v34
    %69 = vmatprep.subr.mxu0 0.0
    %70 = vmatpush1.msra.mxu0 %v35
    %71 = vmatprep.subr.mxu0 0.0
    %72 = vmatpush1.msra.mxu0 %v36
    %73 = vmatprep.subr.mxu0 0.0
    %74 = vmatpush1.msra.mxu0 %v37
    %75 = vmatprep.subr.mxu0 0.0
    %76 = vmatpush1.msra.mxu0 %v38
    %77 = vmatprep.subr.mxu0 0.0
    %78 = vmatpush1.msra.mxu0 %v39
    %79 = vmatprep.subr.mxu0 0.0
    %80 = vmatpush1.msra.mxu0 0.0
    %81 = vmatprep.subr.mxu0 0.0
    %82 = vmatpush1.msra.mxu0 0.0
    %83 = vmatprep.subr.mxu0 0.0
    %84 = vmatpush1.msra.mxu0 0.0
    %85 = vmatprep.subr.mxu0 0.0
    %86 = vmatpush1.msra.mxu0 0.0
    %87 = vmatprep.subr.mxu0 0.0
    %88 = vmatpush1.msra.mxu0 0.0
    %89 = vmatprep.subr.mxu0 0.0
    %90 = vmatpush1.msra.mxu0 0.0
    %91 = vmatprep.subr.mxu0 0.0
    %92 = vmatpush1.msra.mxu0 0.0
    %93 = vmatprep.subr.mxu0 0.0
    %94 = vmatpush1.msra.mxu0 0.0
    %95 = vmatprep.subr.mxu0 0.0
    %96 = vmatpush1.msra.mxu0 0.0
    %97 = vmatprep.subr.mxu0 0.0
    %98 = vmatpush1.msra.mxu0 0.0
    %99 = vmatprep.subr.mxu0 0.0
    %100 = vmatpush1.msra.mxu0 0.0
    %101 = vmatprep.subr.mxu0 0.0
    %102 = vmatpush1.msra.mxu0 0.0
    %103 = vmatprep.subr.mxu0 0.0
    %104 = vmatpush1.msra.mxu0 0.0
    %105 = vmatprep.subr.mxu0 0.0
    %106 = vmatpush1.msra.mxu0 0.0
    %107 = vmatprep.subr.mxu0 0.0
    %108 = vmatpush1.msra.mxu0 0.0
    %109 = vmatprep.subr.mxu0 0.0
    %110 = vmatpush1.msra.mxu0 0.0
    %111 = vmatprep.mubr.f32.mxu0 0.0
    %112 = vmatmul.mubr.f32.gmra.mrb[0].mxu0 %v23
    %v113 = vpop.f32.mrb[0].mxu0
    %v114 = vadd.f32 %v45, %v113
    %v115 = vpop.f32.mrb[0].mxu0
    %116 = vdwg.mxu0
    %v117 = vmax.f32 %v114, 0.0
    %v118 = vld [vmem:[%s3] sm:$0xff]
    %v119 = vld [vmem:[%s3 + $0x8] sm:$0xff]
    %v120 = vld [vmem:[#allocation2] sm:$0x1]
    %v122 = vlaneseq
    %v123 = vshrl.u32 %v122, 7
    %v124 = vsub.s32 0, %v123
    %v125 = vrot.slane %v120, %v124
    %126 = vset.pattern.permute.xlu0 0
    %127 = vperm.xlu0 %126, %v125
    %v128 = vpop.permute.xlu0 %127
    %vm130 = vcmask 130048
    %v132 = vsel %vm130, %v117, 0
    %134 = vmatprep.subr.mxu0 0.0
    %135 = vmatpush1.msra.mxu0 %v118
    %136 = vmatprep.subr.mxu0 0.0
    %137 = vmatpush1.msra.mxu0 %v119
    %138 = vmatprep.subr.mxu0 0.0
    %139 = vmatpush1.msra.mxu0 0.0
    %140 = vmatprep.subr.mxu0 0.0
    %141 = vmatpush1.msra.mxu0 0.0
    %142 = vmatprep.subr.mxu0 0.0
    %143 = vmatpush1.msra.mxu0 0.0
    %144 = vmatprep.subr.mxu0 0.0
    %145 = vmatpush1.msra.mxu0 0.0
    %146 = vmatprep.subr.mxu0 0.0
    %147 = vmatpush1.msra.mxu0 0.0
    %148 = vmatprep.subr.mxu0 0.0
    %149 = vmatpush1.msra.mxu0 0.0
    %150 = vmatprep.subr.mxu0 0.0
    %151 = vmatpush1.msra.mxu0 0.0
    %152 = vmatprep.subr.mxu0 0.0
    %153 = vmatpush1.msra.mxu0 0.0
    %154 = vmatprep.subr.mxu0 0.0
    %155 = vmatpush1.msra.mxu0 0.0
    %156 = vmatprep.subr.mxu0 0.0
    %157 = vmatpush1.msra.mxu0 0.0
    %158 = vmatprep.subr.mxu0 0.0
    %159 = vmatpush1.msra.mxu0 0.0
    %160 = vmatprep.subr.mxu0 0.0
    %161 = vmatpush1.msra.mxu0 0.0
    %162 = vmatprep.subr.mxu0 0.0
    %163 = vmatpush1.msra.mxu0 0.0
    %164 = vmatprep.subr.mxu0 0.0
    %165 = vmatpush1.msra.mxu0 0.0
    %166 = vmatprep.subr.mxu0 0.0
    %167 = vmatpush1.msra.mxu0 0.0
    %168 = vmatprep.subr.mxu0 0.0
    %169 = vmatpush1.msra.mxu0 0.0
    %170 = vmatprep.subr.mxu0 0.0
    %171 = vmatpush1.msra.mxu0 0.0
    %172 = vmatprep.subr.mxu0 0.0
    %173 = vmatpush1.msra.mxu0 0.0
    %174 = vmatprep.subr.mxu0 0.0
    %175 = vmatpush1.msra.mxu0 0.0
    %176 = vmatprep.subr.mxu0 0.0
    %177 = vmatpush1.msra.mxu0 0.0
    %178 = vmatprep.subr.mxu0 0.0
    %179 = vmatpush1.msra.mxu0 0.0
    %180 = vmatprep.subr.mxu0 0.0
    %181 = vmatpush1.msra.mxu0 0.0
    %182 = vmatprep.subr.mxu0 0.0
    %183 = vmatpush1.msra.mxu0 0.0
    %184 = vmatprep.subr.mxu0 0.0
    %185 = vmatpush1.msra.mxu0 0.0
    %186 = vmatprep.subr.mxu0 0.0
    %187 = vmatpush1.msra.mxu0 0.0
    %188 = vmatprep.subr.mxu0 0.0
    %189 = vmatpush1.msra.mxu0 0.0
    %190 = vmatprep.subr.mxu0 0.0
    %191 = vmatpush1.msra.mxu0 0.0
    %192 = vmatprep.subr.mxu0 0.0
    %193 = vmatpush1.msra.mxu0 0.0
    %194 = vmatprep.subr.mxu0 0.0
    %195 = vmatpush1.msra.mxu0 0.0
    %196 = vmatprep.subr.mxu0 0.0
    %197 = vmatpush1.msra.mxu0 0.0
    %198 = vmatprep.mubr.f32.mxu0 0.0
    %199 = vmatmul.mubr.f32.gmra.mrb[0].mxu0 %v132
    %v200 = vpop.f32.mrb[0].mxu0
    %v201 = vadd.f32 %v128, %v200
    %v202 = vpop.f32.mrb[0].mxu0
    %203 = vdwg.mxu0
    %vm204 = vcmask 25600
    %205 = vst.msk [vmem:[#allocation3] sm:$0x3] %vm204, %v201
    // Predicated region
    $region22: #{tpu_custom_call.1} parent=1 // pred_check
      _
    $region23: #{tpu_custom_call.1} parent=1 // pred_check_branch
      %207 = sbr.rel (0) target = $region25
    $region24: #{tpu_custom_call.1} parent=1 // pred_region
      %s209 = ssub.s32 32, 32
      %210 = vsyncadd [#allocation4], %s209
      %s212 = sshll.u32 [#allocation3], 4
      %s213 = int_to_ptr.vmem [resolvable:$true] %s212
      %215 = dma.vmem_to_hbm [thread:$0]  %s213, 32, %s5, [#allocation4]
    $region25: #{tpu_custom_call.1} parent=1 // pred_fallthru
      _
    // Predicated region
    $region26: #{tpu_custom_call.1} parent=1 // pred_check
      _
    $region27: #{tpu_custom_call.1} parent=1 // pred_check_branch
      %217 = sbr.rel (0) target = $region29
    $region28: #{tpu_custom_call.1} parent=1 // pred_region
      %218 = dma.done [#allocation4], 32
    $region29: #{tpu_custom_call.1} parent=1 // pred_fallthru
      _
    %219 = vsyncpa [#allocation4], 1

</llo_original>
